<compile_context>
chip_gen: v7x
topology: tpu7x:2x2x1
jax: 0.10.0
libtpu: 0.0.40
codegen_flags: <defaults>
</compile_context>

<pallas_src>
import functools

import jax
import jax.numpy as jnp
from jax.experimental import pallas as pl
from jax.experimental.pallas import tpu as pltpu


def _round_up(x, m):
    return (x + m - 1) // m * m


def style_vectorizer_kernel(x_ref, w_ref, b_ref, o_ref, *, depth, lr_mul, slope, eps,
                            matmul_dtype):
    # x_ref: (TB, Ep) batch tile; w_ref: (depth, Ep, Ep) pre-transposed (in, out);
    # b_ref: (depth, 1, Ep).  Weights/biases are VMEM-resident across batch tiles.
    x = x_ref[...].astype(jnp.float32)                              # (TB, Ep)

    # F.normalize(x, dim=1): x / max(||x||_2, eps) == x * rsqrt(max(sum_sq, eps^2)).
    ss = jnp.sum(x * x, axis=1, keepdims=True)                      # (TB, 1)
    x = x * jax.lax.rsqrt(jnp.maximum(ss, eps * eps))

    # Unrolled depth loop: y = (x @ Wt + b) * lr_mul ; LeakyReLU(slope).
    for d in range(depth):
        w = w_ref[d]                                                # (Ep, Ep), matmul_dtype
        b = b_ref[d].astype(jnp.float32)                            # (1, Ep)
        y = jnp.dot(x.astype(matmul_dtype), w,
                    preferred_element_type=jnp.float32)
        y = (y + b) * lr_mul
        x = jnp.where(y >= 0.0, y, slope * y)

    o_ref[...] = x.astype(o_ref.dtype)


def style_vectorizer(x, weights, biases, *, lr_mul=0.1, slope=0.2, eps=1e-12,
                     matmul_dtype=jnp.bfloat16, batch_tile=256):
    """x: (B, E); weights: (depth, E, E) in PyTorch (out, in) layout; biases: (depth, 1, E)."""
    B, E = x.shape
    depth = weights.shape[0]

    # Lane-dense feature dim (multiple of 128) and sublane-aligned batch tile.
    Ep = _round_up(E, 128)
    TB = min(_round_up(batch_tile, 8), _round_up(B, 8))
    Bp = _round_up(B, TB)

    # Pre-transpose to (depth, E_in, E_out) so the kernel contracts on the last dim,
    # zero-pad features, cast weights to the MXU dtype (halves weight DMA bytes too).
    wt = jnp.transpose(weights, (0, 2, 1))
    wt = jnp.pad(wt, ((0, 0), (0, Ep - E), (0, Ep - E))).astype(matmul_dtype)
    bp = jnp.pad(biases, ((0, 0), (0, 0), (0, Ep - E))).astype(jnp.float32)
    xp = jnp.pad(x, ((0, Bp - B), (0, Ep - E)))

    # Scoped-VMEM budget: double-buffered x/out tiles + resident weights/biases + headroom.
    wbytes = jnp.dtype(matmul_dtype).itemsize
    vmem_needed = 2 * (2 * TB * Ep * 4 + depth * Ep * Ep * wbytes + depth * Ep * wbytes)
    vmem_limit = int(min(vmem_needed + (16 << 20), 64 << 20))

    kernel = functools.partial(
        style_vectorizer_kernel, depth=depth, lr_mul=lr_mul, slope=slope, eps=eps,
        matmul_dtype=matmul_dtype)

    out = pl.pallas_call(
        kernel,
        out_shape=jax.ShapeDtypeStruct((Bp, Ep), x.dtype),
        grid=(Bp // TB,),
        in_specs=[
            pl.BlockSpec((TB, Ep), lambda i: (i, 0)),              # batch tile of x
            pl.BlockSpec((depth, Ep, Ep), lambda i: (0, 0, 0)),    # resident weights
            pl.BlockSpec((depth, 1, Ep), lambda i: (0, 0, 0)),     # resident biases
        ],
        out_specs=pl.BlockSpec((TB, Ep), lambda i: (i, 0)),
        compiler_params=pltpu.CompilerParams(
            dimension_semantics=("parallel",),
            vmem_limit_bytes=vmem_limit,
        ),
    )(xp, wt, bp)

    # TODO(synk): for very large depth*E^2 (beyond ~16-24 MiB of weights on v7x), switch to
    # per-layer (1, Ep, Ep) weight blocks over an "arbitrary" depth grid axis with the
    # activation resident in the output block.
    return out[:B, :E]


def style_vectorizer_ref(x, weights, biases, *, lr_mul=0.1, slope=0.2, eps=1e-12):
    # Pure-JAX f32 reference mirroring the PyTorch module.
    norm = jnp.sqrt(jnp.sum(x * x, axis=1, keepdims=True))
    h = x / jnp.maximum(norm, eps)
    for d in range(weights.shape[0]):
        y = h @ (weights[d] * lr_mul).T + biases[d] * lr_mul
        h = jnp.where(y >= 0.0, y, slope * y)
    return h


if __name__ == "__main__":
    B, E, DEPTH = 8, 32, 4
    LR_MUL = 0.1

    key = jax.random.PRNGKey(0)
    kx, kw, kb = jax.random.split(key, 3)
    x = jax.random.normal(kx, (B, E), dtype=jnp.float32)
    # EqualLinear params: weight ~ randn(out_dim, in_dim); bias init is zeros in PyTorch,
    # but use small random biases here to exercise the bias path.
    weights = jax.random.normal(kw, (DEPTH, E, E), dtype=jnp.float32)
    biases = 0.1 * jax.random.normal(kb, (DEPTH, 1, E), dtype=jnp.float32)

    ref = style_vectorizer_ref(x, weights, biases, lr_mul=LR_MUL)

    # Tight check with f32 matmuls.
    out_f32 = style_vectorizer(x, weights, biases, lr_mul=LR_MUL, matmul_dtype=jnp.float32)
    out_f32 = jax.block_until_ready(out_f32)
    assert out_f32.shape == (B, E)
    assert jnp.allclose(out_f32, ref, atol=1e-5, rtol=1e-5), "f32 kernel mismatch vs reference"

    # Default bf16-MXU path (f32 accumulation); looser tolerance for bf16 inputs.
    out_bf16 = style_vectorizer(x, weights, biases, lr_mul=LR_MUL)
    out_bf16 = jax.block_until_ready(out_bf16)
    assert out_bf16.shape == (B, E)
    assert jnp.allclose(out_bf16, ref, atol=2e-3, rtol=2e-2), "bf16 kernel mismatch vs reference"

    print("KERNEL_OK")
</pallas_src>

<mosaic_0001>
module attributes {stable_mosaic.version = 11 : i64} {
  func.func @style_vectorizer_kernel(%arg0: i32, %arg1: memref<8x128xf32, #tpu.memory_space<vmem>>, %arg2: memref<4x128x128xf32, #tpu.memory_space<vmem>>, %arg3: memref<4x1x128xf32, #tpu.memory_space<vmem>>, %arg4: memref<8x128xf32, #tpu.memory_space<vmem>>) attributes {dimension_semantics = [#tpu.dimension_semantics<parallel>], iteration_bounds = array<i64: 1>, scalar_prefetch = 0 : i64, scratch_operands = 0 : i64, tpu.core_type = #tpu.core_type<tc>, window_params = [{transform_indices = @transform_0, window_bounds = array<i64: 8, 128>}, {pipeline_mode = #tpu.pipeline_mode<synchronous>, transform_indices = @transform_1, window_bounds = array<i64: 4, 128, 128>}, {pipeline_mode = #tpu.pipeline_mode<synchronous>, transform_indices = @transform_2, window_bounds = array<i64: 4, 1, 128>}, {transform_indices = @transform_3, window_bounds = array<i64: 8, 128>}]} {
    %c0 = arith.constant 0 : index
    %c0_0 = arith.constant 0 : index
    %0 = vector.load %arg1[%c0, %c0_0] : memref<8x128xf32, #tpu.memory_space<vmem>>, vector<8x128xf32>
    %1 = arith.mulf %0, %0 : vector<8x128xf32>
    %cst = arith.constant dense<0.000000e+00> : vector<8xf32>
    %2 = vector.multi_reduction <add>, %1, %cst [1] : vector<8x128xf32> to vector<8xf32>
    %3 = vector.shape_cast %2 : vector<8xf32> to vector<8x1xf32>
    %cst_1 = arith.constant 1.000000e-24 : f32
    %4 = vector.broadcast %cst_1 : f32 to vector<8x1xf32>
    %5 = arith.maximumf %3, %4 : vector<8x1xf32>
    %6 = math.rsqrt %5 : vector<8x1xf32>
    %7 = vector.broadcast %6 : vector<8x1xf32> to vector<8x128xf32>
    %8 = arith.mulf %0, %7 : vector<8x128xf32>
    %c0_2 = arith.constant 0 : index
    %c0_3 = arith.constant 0 : index
    %c0_4 = arith.constant 0 : index
    %9 = vector.load %arg2[%c0_2, %c0_3, %c0_4] : memref<4x128x128xf32, #tpu.memory_space<vmem>>, vector<1x128x128xf32>
    %10 = vector.shape_cast %9 : vector<1x128x128xf32> to vector<128x128xf32>
    %c0_5 = arith.constant 0 : index
    %c0_6 = arith.constant 0 : index
    %c0_7 = arith.constant 0 : index
    %11 = vector.load %arg3[%c0_5, %c0_6, %c0_7] : memref<4x1x128xf32, #tpu.memory_space<vmem>>, vector<1x1x128xf32>
    %12 = vector.shape_cast %11 : vector<1x1x128xf32> to vector<1x128xf32>
    %cst_8 = arith.constant dense<0.000000e+00> : vector<8x128xf32>
    %13 = tpu.matmul %8, %10, %cst_8 {dimension_numbers = #tpu.dot_dimension_numbers<[1], [0], [0], [1], [0, 0, 1, 1], [], []>} : vector<8x128xf32>, vector<128x128xf32>, vector<8x128xf32> -> vector<8x128xf32>
    %14 = vector.broadcast %12 : vector<1x128xf32> to vector<8x128xf32>
    %15 = arith.addf %13, %14 : vector<8x128xf32>
    %cst_9 = arith.constant 1.000000e-01 : f32
    %16 = vector.broadcast %cst_9 : f32 to vector<8x128xf32>
    %17 = arith.mulf %15, %16 : vector<8x128xf32>
    %cst_10 = arith.constant 0.000000e+00 : f32
    %18 = vector.broadcast %cst_10 : f32 to vector<8x128xf32>
    %19 = arith.cmpf oge, %17, %18 : vector<8x128xf32>
    %cst_11 = arith.constant 2.000000e-01 : f32
    %20 = vector.broadcast %cst_11 : f32 to vector<8x128xf32>
    %21 = arith.mulf %20, %17 : vector<8x128xf32>
    %22 = arith.select %19, %17, %21 : vector<8x128xi1>, vector<8x128xf32>
    %c1 = arith.constant 1 : index
    %c0_12 = arith.constant 0 : index
    %c0_13 = arith.constant 0 : index
    %23 = vector.load %arg2[%c1, %c0_12, %c0_13] : memref<4x128x128xf32, #tpu.memory_space<vmem>>, vector<1x128x128xf32>
    %24 = vector.shape_cast %23 : vector<1x128x128xf32> to vector<128x128xf32>
    %c1_14 = arith.constant 1 : index
    %c0_15 = arith.constant 0 : index
    %c0_16 = arith.constant 0 : index
    %25 = vector.load %arg3[%c1_14, %c0_15, %c0_16] : memref<4x1x128xf32, #tpu.memory_space<vmem>>, vector<1x1x128xf32>
    %26 = vector.shape_cast %25 : vector<1x1x128xf32> to vector<1x128xf32>
    %cst_17 = arith.constant dense<0.000000e+00> : vector<8x128xf32>
    %27 = tpu.matmul %22, %24, %cst_17 {dimension_numbers = #tpu.dot_dimension_numbers<[1], [0], [0], [1], [0, 0, 1, 1], [], []>} : vector<8x128xf32>, vector<128x128xf32>, vector<8x128xf32> -> vector<8x128xf32>
    %28 = vector.broadcast %26 : vector<1x128xf32> to vector<8x128xf32>
    %29 = arith.addf %27, %28 : vector<8x128xf32>
    %cst_18 = arith.constant 1.000000e-01 : f32
    %30 = vector.broadcast %cst_18 : f32 to vector<8x128xf32>
    %31 = arith.mulf %29, %30 : vector<8x128xf32>
    %cst_19 = arith.constant 0.000000e+00 : f32
    %32 = vector.broadcast %cst_19 : f32 to vector<8x128xf32>
    %33 = arith.cmpf oge, %31, %32 : vector<8x128xf32>
    %cst_20 = arith.constant 2.000000e-01 : f32
    %34 = vector.broadcast %cst_20 : f32 to vector<8x128xf32>
    %35 = arith.mulf %34, %31 : vector<8x128xf32>
    %36 = arith.select %33, %31, %35 : vector<8x128xi1>, vector<8x128xf32>
    %c2 = arith.constant 2 : index
    %c0_21 = arith.constant 0 : index
    %c0_22 = arith.constant 0 : index
    %37 = vector.load %arg2[%c2, %c0_21, %c0_22] : memref<4x128x128xf32, #tpu.memory_space<vmem>>, vector<1x128x128xf32>
    %38 = vector.shape_cast %37 : vector<1x128x128xf32> to vector<128x128xf32>
    %c2_23 = arith.constant 2 : index
    %c0_24 = arith.constant 0 : index
    %c0_25 = arith.constant 0 : index
    %39 = vector.load %arg3[%c2_23, %c0_24, %c0_25] : memref<4x1x128xf32, #tpu.memory_space<vmem>>, vector<1x1x128xf32>
    %40 = vector.shape_cast %39 : vector<1x1x128xf32> to vector<1x128xf32>
    %cst_26 = arith.constant dense<0.000000e+00> : vector<8x128xf32>
    %41 = tpu.matmul %36, %38, %cst_26 {dimension_numbers = #tpu.dot_dimension_numbers<[1], [0], [0], [1], [0, 0, 1, 1], [], []>} : vector<8x128xf32>, vector<128x128xf32>, vector<8x128xf32> -> vector<8x128xf32>
    %42 = vector.broadcast %40 : vector<1x128xf32> to vector<8x128xf32>
    %43 = arith.addf %41, %42 : vector<8x128xf32>
    %cst_27 = arith.constant 1.000000e-01 : f32
    %44 = vector.broadcast %cst_27 : f32 to vector<8x128xf32>
    %45 = arith.mulf %43, %44 : vector<8x128xf32>
    %cst_28 = arith.constant 0.000000e+00 : f32
    %46 = vector.broadcast %cst_28 : f32 to vector<8x128xf32>
    %47 = arith.cmpf oge, %45, %46 : vector<8x128xf32>
    %cst_29 = arith.constant 2.000000e-01 : f32
    %48 = vector.broadcast %cst_29 : f32 to vector<8x128xf32>
    %49 = arith.mulf %48, %45 : vector<8x128xf32>
    %50 = arith.select %47, %45, %49 : vector<8x128xi1>, vector<8x128xf32>
    %c3 = arith.constant 3 : index
    %c0_30 = arith.constant 0 : index
    %c0_31 = arith.constant 0 : index
    %51 = vector.load %arg2[%c3, %c0_30, %c0_31] : memref<4x128x128xf32, #tpu.memory_space<vmem>>, vector<1x128x128xf32>
    %52 = vector.shape_cast %51 : vector<1x128x128xf32> to vector<128x128xf32>
    %c3_32 = arith.constant 3 : index
    %c0_33 = arith.constant 0 : index
    %c0_34 = arith.constant 0 : index
    %53 = vector.load %arg3[%c3_32, %c0_33, %c0_34] : memref<4x1x128xf32, #tpu.memory_space<vmem>>, vector<1x1x128xf32>
    %54 = vector.shape_cast %53 : vector<1x1x128xf32> to vector<1x128xf32>
    %cst_35 = arith.constant dense<0.000000e+00> : vector<8x128xf32>
    %55 = tpu.matmul %50, %52, %cst_35 {dimension_numbers = #tpu.dot_dimension_numbers<[1], [0], [0], [1], [0, 0, 1, 1], [], []>} : vector<8x128xf32>, vector<128x128xf32>, vector<8x128xf32> -> vector<8x128xf32>
    %56 = vector.broadcast %54 : vector<1x128xf32> to vector<8x128xf32>
    %57 = arith.addf %55, %56 : vector<8x128xf32>
    %cst_36 = arith.constant 1.000000e-01 : f32
    %58 = vector.broadcast %cst_36 : f32 to vector<8x128xf32>
    %59 = arith.mulf %57, %58 : vector<8x128xf32>
    %cst_37 = arith.constant 0.000000e+00 : f32
    %60 = vector.broadcast %cst_37 : f32 to vector<8x128xf32>
    %61 = arith.cmpf oge, %59, %60 : vector<8x128xf32>
    %cst_38 = arith.constant 2.000000e-01 : f32
    %62 = vector.broadcast %cst_38 : f32 to vector<8x128xf32>
    %63 = arith.mulf %62, %59 : vector<8x128xf32>
    %64 = arith.select %61, %59, %63 : vector<8x128xi1>, vector<8x128xf32>
    %c0_39 = arith.constant 0 : index
    %c0_40 = arith.constant 0 : index
    %65 = vector.load %arg4[%c0_39, %c0_40] : memref<8x128xf32, #tpu.memory_space<vmem>>, vector<8x128xf32>
    tpu.vector_store %arg4[%c0_39, %c0_40], %64 {strides = array<i32>} : memref<8x128xf32, #tpu.memory_space<vmem>>, vector<8x128xf32>,
    return
  }
  func.func @transform_0(%arg0: i32) -> (i32, i32) {
    %c0_i32 = arith.constant 0 : i32
    %c0_i32_0 = arith.constant 0 : i32
    return %arg0, %c0_i32 : i32, i32
  }
  func.func @transform_1(%arg0: i32) -> (i32, i32, i32) {
    %c0_i32 = arith.constant 0 : i32
    %c0_i32_0 = arith.constant 0 : i32
    %c0_i32_1 = arith.constant 0 : i32
    %c0_i32_2 = arith.constant 0 : i32
    return %c0_i32, %c0_i32_0, %c0_i32_1 : i32, i32, i32
  }
  func.func @transform_2(%arg0: i32) -> (i32, i32, i32) {
    %c0_i32 = arith.constant 0 : i32
    %c0_i32_0 = arith.constant 0 : i32
    %c0_i32_1 = arith.constant 0 : i32
    %c0_i32_2 = arith.constant 0 : i32
    return %c0_i32, %c0_i32_0, %c0_i32_1 : i32, i32, i32
  }
  func.func @transform_3(%arg0: i32) -> (i32, i32) {
    %c0_i32 = arith.constant 0 : i32
    %c0_i32_0 = arith.constant 0 : i32
    return %arg0, %c0_i32 : i32, i32
  }
}

</mosaic_0001>

<llo_original>
// kernel: tpu_custom_call.1
$region0: #{tpu_custom_call.1}
  #allocation0 [shape = 'u32[]', space=smem, size = 0x4, offset = 0x4, fixed_abs, tag = 'smem constant byte address 0x4 - core index']
  #allocation1 [shape = 'u32[144,128]{1,0:T(1,128)}', space=vmem, size = 0x12000, scoped, tag = 'internal scratch']
  %s0 = inlined_call_operand.hbm [shape: f32[8,128], index: 0, kind: input, shape index: {}]
  %s1 = inlined_call_operand.hbm [shape: f32[4,128,128], index: 1, kind: input, shape index: {}]
  %s2 = inlined_call_operand.vmem [shape: f32[4,1,128], index: 2, kind: input, shape index: {}]
  %s3 = inlined_call_operand.hbm [shape: f32[8,128], index: 3, kind: output, shape index: {}]
  %s4 = sld [smem:[#allocation0]]
  $region30: #{tpu_custom_call.1} parent=0
    _
  %s6 = ssub.s32 1, %s4
  %s7 = scalar_select 0, %s6, %s4
  $region1: #{tpu_custom_call.1} parent=0
    #allocation2 [shape = 'u8[4096]{0}', space=vmem, size = 0x1000, scoped, tag = 'input window, operand 0, single buffered']
    #allocation3 [shape = 's32[1]{0}', space=sflag, size = 0x4, scoped, tag = 'scoped memory for tpu_custom_call.1']
    #allocation4 [shape = 's32[1]{0}', space=sflag, size = 0x4, scoped, tag = 'scoped memory for tpu_custom_call.1']
    #allocation5 [shape = 'u8[262144]{0}', space=vmem, size = 0x40000, scoped, tag = 'input window, operand 1, single buffered']
    #allocation6 [shape = 's32[1]{0}', space=sflag, size = 0x4, scoped, tag = 'scoped memory for tpu_custom_call.1']
    #allocation7 [shape = 'u8[4096]{0}', space=vmem, size = 0x1000, scoped, tag = 'output window, operand 0, single buffered']
    %8 = vsyncpa [#allocation3], 0
    %9 = vsyncpa [#allocation6], 0
    %10 = vsyncpa [#allocation4], 0
    // Predicated region
    $region2: #{tpu_custom_call.1} parent=1 // pred_check
      _
    $region3: #{tpu_custom_call.1} parent=1 // pred_check_branch
      %12 = sbr.rel (0) target = $region5
    $region4: #{tpu_custom_call.1} parent=1 // pred_region
      %s14 = ssub.s32 128, 128
      %15 = vsyncadd [#allocation3], %s14
      %s17 = sshll.u32 [#allocation2], 4
      %s18 = int_to_ptr.vmem [resolvable:$true] %s17
      %20 = dma.hbm_to_vmem [thread:$0]  %s0, 128, %s18, [#allocation3]
    $region5: #{tpu_custom_call.1} parent=1 // pred_fallthru
      _
    // Predicated region
    $region6: #{tpu_custom_call.1} parent=1 // pred_check
      _
    $region7: #{tpu_custom_call.1} parent=1 // pred_check_branch
      %22 = sbr.rel (0) target = $region9
    $region8: #{tpu_custom_call.1} parent=1 // pred_region
      %s24 = ssub.s32 8192, 8192
      %25 = vsyncadd [#allocation6], %s24
      %s26 = sshll.u32 [#allocation5], 4
      %s27 = int_to_ptr.vmem [resolvable:$true] %s26
      %32 = dma.hbm_to_vmem [thread:$0]  %s1, 8192, %s27, [#allocation6], 128, 128, 8
    $region9: #{tpu_custom_call.1} parent=1 // pred_fallthru
      _
    // Predicated region
    $region10: #{tpu_custom_call.1} parent=1 // pred_check
      _
    $region11: #{tpu_custom_call.1} parent=1 // pred_check_branch
      %34 = sbr.rel (0) target = $region13
    $region12: #{tpu_custom_call.1} parent=1 // pred_region
      _
    $region13: #{tpu_custom_call.1} parent=1 // pred_fallthru
      _
    // Predicated region
    $region14: #{tpu_custom_call.1} parent=1 // pred_check
      _
    $region15: #{tpu_custom_call.1} parent=1 // pred_check_branch
      %36 = sbr.rel (0) target = $region17
    $region16: #{tpu_custom_call.1} parent=1 // pred_region
      %37 = dma.done [#allocation3], 128
    $region17: #{tpu_custom_call.1} parent=1 // pred_fallthru
      _
    // Predicated region
    $region18: #{tpu_custom_call.1} parent=1 // pred_check
      _
    $region19: #{tpu_custom_call.1} parent=1 // pred_check_branch
      %39 = sbr.rel (0) target = $region21
    $region20: #{tpu_custom_call.1} parent=1 // pred_region
      %40 = dma.done [#allocation6], 8192
    $region21: #{tpu_custom_call.1} parent=1 // pred_fallthru
      _
    %v41 = vld [vmem:[#allocation2] sm:$0xff]
    %v42 = vmul.f32 %v41, %v41
    %43 = vadd.xlane.f32.xlu0 %v42
    %v44 = vpop.xlane.xlu0 %43
    %v45 = vmax.f32 %v44, 1e-24
    %v46 = vrsqrt.pop %v45
    %v47 = vmul.f32 %v41, %v46
    %v48 = vld [vmem:[#allocation5] sm:$0xff]
    %v49 = vld [vmem:[#allocation5 + $0x8] sm:$0xff]
    %v50 = vld [vmem:[#allocation5 + $0x10] sm:$0xff]
    %v51 = vld [vmem:[#allocation5 + $0x18] sm:$0xff]
    %v52 = vld [vmem:[#allocation5 + $0x20] sm:$0xff]
    %v53 = vld [vmem:[#allocation5 + $0x28] sm:$0xff]
    %v54 = vld [vmem:[#allocation5 + $0x30] sm:$0xff]
    %v55 = vld [vmem:[#allocation5 + $0x38] sm:$0xff]
    %v56 = vld [vmem:[#allocation5 + $0x40] sm:$0xff]
    %v57 = vld [vmem:[#allocation5 + $0x48] sm:$0xff]
    %v58 = vld [vmem:[#allocation5 + $0x50] sm:$0xff]
    %v59 = vld [vmem:[#allocation5 + $0x58] sm:$0xff]
    %v60 = vld [vmem:[#allocation5 + $0x60] sm:$0xff]
    %v61 = vld [vmem:[#allocation5 + $0x68] sm:$0xff]
    %v62 = vld [vmem:[#allocation5 + $0x70] sm:$0xff]
    %v63 = vld [vmem:[#allocation5 + $0x78] sm:$0xff]
    %v64 = vld [vmem:[%s2] sm:$0x1]
    %v66 = vlaneseq
    %v67 = vshrl.u32 %v66, 7
    %v68 = vsub.s32 0, %v67
    %v69 = vrot.slane %v64, %v68
    %71 = vmatprep.subr.mxu0 0.0
    %72 = vmatpush1.msra.mxu0 %v48
    %73 = vmatprep.subr.mxu0 0.0
    %74 = vmatpush1.msra.mxu0 %v49
    %75 = vmatprep.subr.mxu0 0.0
    %76 = vmatpush1.msra.mxu0 %v50
    %77 = vmatprep.subr.mxu0 0.0
    %78 = vmatpush1.msra.mxu0 %v51
    %79 = vmatprep.subr.mxu0 0.0
    %80 = vmatpush1.msra.mxu0 %v52
    %81 = vmatprep.subr.mxu0 0.0
    %82 = vmatpush1.msra.mxu0 %v53
    %83 = vmatprep.subr.mxu0 0.0
    %84 = vmatpush1.msra.mxu0 %v54
    %85 = vmatprep.subr.mxu0 0.0
    %86 = vmatpush1.msra.mxu0 %v55
    %87 = vmatprep.subr.mxu0 0.0
    %88 = vmatpush1.msra.mxu0 %v56
    %89 = vmatprep.subr.mxu0 0.0
    %90 = vmatpush1.msra.mxu0 %v57
    %91 = vmatprep.subr.mxu0 0.0
    %92 = vmatpush1.msra.mxu0 %v58
    %93 = vmatprep.subr.mxu0 0.0
    %94 = vmatpush1.msra.mxu0 %v59
    %95 = vmatprep.subr.mxu0 0.0
    %96 = vmatpush1.msra.mxu0 %v60
    %97 = vmatprep.subr.mxu0 0.0
    %98 = vmatpush1.msra.mxu0 %v61
    %99 = vmatprep.subr.mxu0 0.0
    %100 = vmatpush1.msra.mxu0 %v62
    %101 = vmatprep.subr.mxu0 0.0
    %102 = vmatpush1.msra.mxu0 %v63
    %103 = vmatprep.subr.mxu0 0.0
    %104 = vmatpush1.msra.mxu0 0.0
    %105 = vmatprep.subr.mxu0 0.0
    %106 = vmatpush1.msra.mxu0 0.0
    %107 = vmatprep.subr.mxu0 0.0
    %108 = vmatpush1.msra.mxu0 0.0
    %109 = vmatprep.subr.mxu0 0.0
    %110 = vmatpush1.msra.mxu0 0.0
    %111 = vmatprep.subr.mxu0 0.0
    %112 = vmatpush1.msra.mxu0 0.0
    %113 = vmatprep.subr.mxu0 0.0
    %114 = vmatpush1.msra.mxu0 0.0
    %115 = vmatprep.subr.mxu0 0.0
    %116 = vmatpush1.msra.mxu0 0.0
    %117 = vmatprep.subr.mxu0 0.0
    %118 = vmatpush1.msra.mxu0 0.0
    %119 = vmatprep.subr.mxu0 0.0
    %120 = vmatpush1.msra.mxu0 0.0
    %121 = vmatprep.subr.mxu0 0.0
    %122 = vmatpush1.msra.mxu0 0.0
    %123 = vmatprep.subr.mxu0 0.0
    %124 = vmatpush1.msra.mxu0 0.0
    %125 = vmatprep.subr.mxu0 0.0
    %126 = vmatpush1.msra.mxu0 0.0
    %127 = vmatprep.subr.mxu0 0.0
    %128 = vmatpush1.msra.mxu0 0.0
    %129 = vmatprep.subr.mxu0 0.0
    %130 = vmatpush1.msra.mxu0 0.0
    %131 = vmatprep.subr.mxu0 0.0
    %132 = vmatpush1.msra.mxu0 0.0
    %133 = vmatprep.subr.mxu0 0.0
    %134 = vmatpush1.msra.mxu0 0.0
    %135 = vmatprep.mubr.f32.mxu0 0.0
    %136 = vmatmul.mubr.f32.gmra.mrb[0].mxu0 %v47
    %v137 = vpop.f32.mrb[0].mxu0
    %v138 = vadd.f32 %v69, %v137
    %v139 = vpop.f32.mrb[0].mxu0
    %140 = vdwg.mxu0
    %v141 = vmul.f32 %v138, 0.1
    %vm142 = vcmp.ge.f32.partialorder %v141, 0.0
    %v143 = vmul.f32 %v141, 0.2
    %v144 = vsel %vm142, %v141, %v143
    %s145 = scalar_lea.vmem [#allocation5], 128
    %v146 = vld [vmem:[%s145] sm:$0xff]
    %v147 = vld [vmem:[%s145 + $0x8] sm:$0xff]
    %v148 = vld [vmem:[%s145 + $0x10] sm:$0xff]
    %v149 = vld [vmem:[%s145 + $0x18] sm:$0xff]
    %v150 = vld [vmem:[%s145 + $0x20] sm:$0xff]
    %v151 = vld [vmem:[%s145 + $0x28] sm:$0xff]
    %v152 = vld [vmem:[%s145 + $0x30] sm:$0xff]
    %v153 = vld [vmem:[%s145 + $0x38] sm:$0xff]
    %v154 = vld [vmem:[%s145 + $0x40] sm:$0xff]
    %v155 = vld [vmem:[%s145 + $0x48] sm:$0xff]
    %v156 = vld [vmem:[%s145 + $0x50] sm:$0xff]
    %v157 = vld [vmem:[%s145 + $0x58] sm:$0xff]
    %v158 = vld [vmem:[%s145 + $0x60] sm:$0xff]
    %v159 = vld [vmem:[%s145 + $0x68] sm:$0xff]
    %v160 = vld [vmem:[%s145 + $0x70] sm:$0xff]
    %v161 = vld [vmem:[%s145 + $0x78] sm:$0xff]
    %s162 = scalar_lea.vmem %s2, 1
    %v163 = vld [vmem:[%s162] sm:$0x1]
    %v165 = vlaneseq
    %v166 = vshrl.u32 %v165, 7
    %v167 = vsub.s32 0, %v166
    %v168 = vrot.slane %v163, %v167
    %170 = vmatprep.subr.mxu0 0.0
    %171 = vmatpush1.msra.mxu0 %v146
    %172 = vmatprep.subr.mxu0 0.0
    %173 = vmatpush1.msra.mxu0 %v147
    %174 = vmatprep.subr.mxu0 0.0
    %175 = vmatpush1.msra.mxu0 %v148
    %176 = vmatprep.subr.mxu0 0.0
    %177 = vmatpush1.msra.mxu0 %v149
    %178 = vmatprep.subr.mxu0 0.0
    %179 = vmatpush1.msra.mxu0 %v150
    %180 = vmatprep.subr.mxu0 0.0
    %181 = vmatpush1.msra.mxu0 %v151
    %182 = vmatprep.subr.mxu0 0.0
    %183 = vmatpush1.msra.mxu0 %v152
    %184 = vmatprep.subr.mxu0 0.0
    %185 = vmatpush1.msra.mxu0 %v153
    %186 = vmatprep.subr.mxu0 0.0
    %187 = vmatpush1.msra.mxu0 %v154
    %188 = vmatprep.subr.mxu0 0.0
    %189 = vmatpush1.msra.mxu0 %v155
    %190 = vmatprep.subr.mxu0 0.0
    %191 = vmatpush1.msra.mxu0 %v156
    %192 = vmatprep.subr.mxu0 0.0
    %193 = vmatpush1.msra.mxu0 %v157
    %194 = vmatprep.subr.mxu0 0.0
    %195 = vmatpush1.msra.mxu0 %v158
    %196 = vmatprep.subr.mxu0 0.0
    %197 = vmatpush1.msra.mxu0 %v159
    %198 = vmatprep.subr.mxu0 0.0
    %199 = vmatpush1.msra.mxu0 %v160
    %200 = vmatprep.subr.mxu0 0.0
    %201 = vmatpush1.msra.mxu0 %v161
    %202 = vmatprep.subr.mxu0 0.0
    %203 = vmatpush1.msra.mxu0 0.0
    %204 = vmatprep.subr.mxu0 0.0
    %205 = vmatpush1.msra.mxu0 0.0
    %206 = vmatprep.subr.mxu0 0.0
    %207 = vmatpush1.msra.mxu0 0.0
    %208 = vmatprep.subr.mxu0 0.0
    %209 = vmatpush1.msra.mxu0 0.0
    %210 = vmatprep.subr.mxu0 0.0
    %211 = vmatpush1.msra.mxu0 0.0
    %212 = vmatprep.subr.mxu0 0.0
    %213 = vmatpush1.msra.mxu0 0.0
    %214 = vmatprep.subr.mxu0 0.0
    %215 = vmatpush1.msra.mxu0 0.0
    %216 = vmatprep.subr.mxu0 0.0
    %217 = vmatpush1.msra.mxu0 0.0
    %218 = vmatprep.subr.mxu0 0.0
    %219 = vmatpush1.msra.mxu0 0.0
    %220 = vmatprep.subr.mxu0 0.0
    %221 = vmatpush1.msra.mxu0 0.0
    %222 = vmatprep.subr.mxu0 0.0
    %223 = vmatpush1.msra.mxu0 0.0
    %224 = vmatprep.subr.mxu0 0.0
    %225 = vmatpush1.msra.mxu0 0.0
    %226 = vmatprep.subr.mxu0 0.0
    %227 = vmatpush1.msra.mxu0 0.0
    %228 = vmatprep.subr.mxu0 0.0
    %229 = vmatpush1.msra.mxu0 0.0
    %230 = vmatprep.subr.mxu0 0.0
    %231 = vmatpush1.msra.mxu0 0.0
    %232 = vmatprep.subr.mxu0 0.0
    %233 = vmatpush1.msra.mxu0 0.0
    %234 = vmatprep.mubr.f32.mxu0 0.0
    %235 = vmatmul.mubr.f32.gmra.mrb[0].mxu0 %v144
    %v236 = vpop.f32.mrb[0].mxu0
    %v237 = vadd.f32 %v168, %v236
    %v238 = vpop.f32.mrb[0].mxu0
    %239 = vdwg.mxu0
    %v240 = vmul.f32 %v237, 0.1
    %vm241 = vcmp.ge.f32.partialorder %v240, 0.0
    %v242 = vmul.f32 %v240, 0.2
    %v243 = vsel %vm241, %v240, %v242
    %s244 = scalar_lea.vmem [#allocation5], 256
    %v245 = vld [vmem:[%s244] sm:$0xff]
    %v246 = vld [vmem:[%s244 + $0x8] sm:$0xff]
    %v247 = vld [vmem:[%s244 + $0x10] sm:$0xff]
    %v248 = vld [vmem:[%s244 + $0x18] sm:$0xff]
    %v249 = vld [vmem:[%s244 + $0x20] sm:$0xff]
    %v250 = vld [vmem:[%s244 + $0x28] sm:$0xff]
    %v251 = vld [vmem:[%s244 + $0x30] sm:$0xff]
    %v252 = vld [vmem:[%s244 + $0x38] sm:$0xff]
    %v253 = vld [vmem:[%s244 + $0x40] sm:$0xff]
    %v254 = vld [vmem:[%s244 + $0x48] sm:$0xff]
    %v255 = vld [vmem:[%s244 + $0x50] sm:$0xff]
    %v256 = vld [vmem:[%s244 + $0x58] sm:$0xff]
    %v257 = vld [vmem:[%s244 + $0x60] sm:$0xff]
    %v258 = vld [vmem:[%s244 + $0x68] sm:$0xff]
    %v259 = vld [vmem:[%s244 + $0x70] sm:$0xff]
    %v260 = vld [vmem:[%s244 + $0x78] sm:$0xff]
    %s261 = scalar_lea.vmem %s2, 2
    %v262 = vld [vmem:[%s261] sm:$0x1]
    %v264 = vlaneseq
    %v265 = vshrl.u32 %v264, 7
    %v266 = vsub.s32 0, %v265
    %v267 = vrot.slane %v262, %v266
    %269 = vmatprep.subr.mxu0 0.0
    %270 = vmatpush1.msra.mxu0 %v245
    %271 = vmatprep.subr.mxu0 0.0
    %272 = vmatpush1.msra.mxu0 %v246
    %273 = vmatprep.subr.mxu0 0.0
    %274 = vmatpush1.msra.mxu0 %v247
    %275 = vmatprep.subr.mxu0 0.0
    %276 = vmatpush1.msra.mxu0 %v248
    %277 = vmatprep.subr.mxu0 0.0
    %278 = vmatpush1.msra.mxu0 %v249
    %279 = vmatprep.subr.mxu0 0.0
    %280 = vmatpush1.msra.mxu0 %v250
    %281 = vmatprep.subr.mxu0 0.0
    %282 = vmatpush1.msra.mxu0 %v251
    %283 = vmatprep.subr.mxu0 0.0
    %284 = vmatpush1.msra.mxu0 %v252
    %285 = vmatprep.subr.mxu0 0.0
    %286 = vmatpush1.msra.mxu0 %v253
    %287 = vmatprep.subr.mxu0 0.0
    %288 = vmatpush1.msra.mxu0 %v254
    %289 = vmatprep.subr.mxu0 0.0
    %290 = vmatpush1.msra.mxu0 %v255
    %291 = vmatprep.subr.mxu0 0.0
    %292 = vmatpush1.msra.mxu0 %v256
    %293 = vmatprep.subr.mxu0 0.0
    %294 = vmatpush1.msra.mxu0 %v257
    %295 = vmatprep.subr.mxu0 0.0
    %296 = vmatpush1.msra.mxu0 %v258
    %297 = vmatprep.subr.mxu0 0.0
    %298 = vmatpush1.msra.mxu0 %v259
    %299 = vmatprep.subr.mxu0 0.0
    %300 = vmatpush1.msra.mxu0 %v260
    %301 = vmatprep.subr.mxu0 0.0
    %302 = vmatpush1.msra.mxu0 0.0
    %303 = vmatprep.subr.mxu0 0.0
    %304 = vmatpush1.msra.mxu0 0.0
    %305 = vmatprep.subr.mxu0 0.0
    %306 = vmatpush1.msra.mxu0 0.0
    %307 = vmatprep.subr.mxu0 0.0
    %308 = vmatpush1.msra.mxu0 0.0
    %309 = vmatprep.subr.mxu0 0.0
    %310 = vmatpush1.msra.mxu0 0.0
    %311 = vmatprep.subr.mxu0 0.0
    %312 = vmatpush1.msra.mxu0 0.0
    %313 = vmatprep.subr.mxu0 0.0
    %314 = vmatpush1.msra.mxu0 0.0
    %315 = vmatprep.subr.mxu0 0.0
    %316 = vmatpush1.msra.mxu0 0.0
    %317 = vmatprep.subr.mxu0 0.0
    %318 = vmatpush1.msra.mxu0 0.0
    %319 = vmatprep.subr.mxu0 0.0
    %320 = vmatpush1.msra.mxu0 0.0
    %321 = vmatprep.subr.mxu0 0.0
    %322 = vmatpush1.msra.mxu0 0.0
    %323 = vmatprep.subr.mxu0 0.0
    %324 = vmatpush1.msra.mxu0 0.0
    %325 = vmatprep.subr.mxu0 0.0
    %326 = vmatpush1.msra.mxu0 0.0
    %327 = vmatprep.subr.mxu0 0.0
    %328 = vmatpush1.msra.mxu0 0.0
    %329 = vmatprep.subr.mxu0 0.0
    %330 = vmatpush1.msra.mxu0 0.0
    %331 = vmatprep.subr.mxu0 0.0
    %332 = vmatpush1.msra.mxu0 0.0
    %333 = vmatprep.mubr.f32.mxu0 0.0
    %334 = vmatmul.mubr.f32.gmra.mrb[0].mxu0 %v243
    %v335 = vpop.f32.mrb[0].mxu0
    %v336 = vadd.f32 %v267, %v335
    %v337 = vpop.f32.mrb[0].mxu0
    %338 = vdwg.mxu0
    %v339 = vmul.f32 %v336, 0.1
    %vm340 = vcmp.ge.f32.partialorder %v339, 0.0
    %v341 = vmul.f32 %v339, 0.2
    %v342 = vsel %vm340, %v339, %v341
    %s343 = scalar_lea.vmem [#allocation5], 384
    %v344 = vld [vmem:[%s343] sm:$0xff]
    %v345 = vld [vmem:[%s343 + $0x8] sm:$0xff]
    %v346 = vld [vmem:[%s343 + $0x10] sm:$0xff]
    %v347 = vld [vmem:[%s343 + $0x18] sm:$0xff]
    %v348 = vld [vmem:[%s343 + $0x20] sm:$0xff]
    %v349 = vld [vmem:[%s343 + $0x28] sm:$0xff]
    %v350 = vld [vmem:[%s343 + $0x30] sm:$0xff]
    %v351 = vld [vmem:[%s343 + $0x38] sm:$0xff]
    %v352 = vld [vmem:[%s343 + $0x40] sm:$0xff]
    %v353 = vld [vmem:[%s343 + $0x48] sm:$0xff]
    %v354 = vld [vmem:[%s343 + $0x50] sm:$0xff]
    %v355 = vld [vmem:[%s343 + $0x58] sm:$0xff]
    %v356 = vld [vmem:[%s343 + $0x60] sm:$0xff]
    %v357 = vld [vmem:[%s343 + $0x68] sm:$0xff]
    %v358 = vld [vmem:[%s343 + $0x70] sm:$0xff]
    %v359 = vld [vmem:[%s343 + $0x78] sm:$0xff]
    %s360 = scalar_lea.vmem %s2, 3
    %v361 = vld [vmem:[%s360] sm:$0x1]
    %v363 = vlaneseq
    %v364 = vshrl.u32 %v363, 7
    %v365 = vsub.s32 0, %v364
    %v366 = vrot.slane %v361, %v365
    %368 = vmatprep.subr.mxu0 0.0
    %369 = vmatpush1.msra.mxu0 %v344
    %370 = vmatprep.subr.mxu0 0.0
    %371 = vmatpush1.msra.mxu0 %v345
    %372 = vmatprep.subr.mxu0 0.0
    %373 = vmatpush1.msra.mxu0 %v346
    %374 = vmatprep.subr.mxu0 0.0
    %375 = vmatpush1.msra.mxu0 %v347
    %376 = vmatprep.subr.mxu0 0.0
    %377 = vmatpush1.msra.mxu0 %v348
    %378 = vmatprep.subr.mxu0 0.0
    %379 = vmatpush1.msra.mxu0 %v349
    %380 = vmatprep.subr.mxu0 0.0
    %381 = vmatpush1.msra.mxu0 %v350
    %382 = vmatprep.subr.mxu0 0.0
    %383 = vmatpush1.msra.mxu0 %v351
    %384 = vmatprep.subr.mxu0 0.0
    %385 = vmatpush1.msra.mxu0 %v352
    %386 = vmatprep.subr.mxu0 0.0
    %387 = vmatpush1.msra.mxu0 %v353
    %388 = vmatprep.subr.mxu0 0.0
    %389 = vmatpush1.msra.mxu0 %v354
    %390 = vmatprep.subr.mxu0 0.0
    %391 = vmatpush1.msra.mxu0 %v355
    %392 = vmatprep.subr.mxu0 0.0
    %393 = vmatpush1.msra.mxu0 %v356
    %394 = vmatprep.subr.mxu0 0.0
    %395 = vmatpush1.msra.mxu0 %v357
    %396 = vmatprep.subr.mxu0 0.0
    %397 = vmatpush1.msra.mxu0 %v358
    %398 = vmatprep.subr.mxu0 0.0
    %399 = vmatpush1.msra.mxu0 %v359
    %400 = vmatprep.subr.mxu0 0.0
    %401 = vmatpush1.msra.mxu0 0.0
    %402 = vmatprep.subr.mxu0 0.0
    %403 = vmatpush1.msra.mxu0 0.0
    %404 = vmatprep.subr.mxu0 0.0
    %405 = vmatpush1.msra.mxu0 0.0
    %406 = vmatprep.subr.mxu0 0.0
    %407 = vmatpush1.msra.mxu0 0.0
    %408 = vmatprep.subr.mxu0 0.0
    %409 = vmatpush1.msra.mxu0 0.0
    %410 = vmatprep.subr.mxu0 0.0
    %411 = vmatpush1.msra.mxu0 0.0
    %412 = vmatprep.subr.mxu0 0.0
    %413 = vmatpush1.msra.mxu0 0.0
    %414 = vmatprep.subr.mxu0 0.0
    %415 = vmatpush1.msra.mxu0 0.0
    %416 = vmatprep.subr.mxu0 0.0
    %417 = vmatpush1.msra.mxu0 0.0
    %418 = vmatprep.subr.mxu0 0.0
    %419 = vmatpush1.msra.mxu0 0.0
    %420 = vmatprep.subr.mxu0 0.0
    %421 = vmatpush1.msra.mxu0 0.0
    %422 = vmatprep.subr.mxu0 0.0
    %423 = vmatpush1.msra.mxu0 0.0
    %424 = vmatprep.subr.mxu0 0.0
    %425 = vmatpush1.msra.mxu0 0.0
    %426 = vmatprep.subr.mxu0 0.0
    %427 = vmatpush1.msra.mxu0 0.0
    %428 = vmatprep.subr.mxu0 0.0
    %429 = vmatpush1.msra.mxu0 0.0
    %430 = vmatprep.subr.mxu0 0.0
    %431 = vmatpush1.msra.mxu0 0.0
    %432 = vmatprep.mubr.f32.mxu0 0.0
    %433 = vmatmul.mubr.f32.gmra.mrb[0].mxu0 %v342
    %v434 = vpop.f32.mrb[0].mxu0
    %v435 = vadd.f32 %v366, %v434
    %v436 = vpop.f32.mrb[0].mxu0
    %437 = vdwg.mxu0
    %v438 = vmul.f32 %v435, 0.1
    %vm439 = vcmp.ge.f32.partialorder %v438, 0.0
    %v440 = vmul.f32 %v438, 0.2
    %v441 = vsel %vm439, %v438, %v440
    %442 = vst [vmem:[#allocation7] sm:$0xff] %v441
    // Predicated region
    $region22: #{tpu_custom_call.1} parent=1 // pred_check
      _
    $region23: #{tpu_custom_call.1} parent=1 // pred_check_branch
      %444 = sbr.rel (0) target = $region25
    $region24: #{tpu_custom_call.1} parent=1 // pred_region
      %s446 = ssub.s32 128, 128
      %447 = vsyncadd [#allocation4], %s446
      %s449 = sshll.u32 [#allocation7], 4
      %s450 = int_to_ptr.vmem [resolvable:$true] %s449
      %452 = dma.vmem_to_hbm [thread:$0]  %s450, 128, %s3, [#allocation4]
    $region25: #{tpu_custom_call.1} parent=1 // pred_fallthru
      _
    // Predicated region
    $region26: #{tpu_custom_call.1} parent=1 // pred_check
      _
    $region27: #{tpu_custom_call.1} parent=1 // pred_check_branch
      %454 = sbr.rel (0) target = $region29
    $region28: #{tpu_custom_call.1} parent=1 // pred_region
      %455 = dma.done [#allocation4], 128
    $region29: #{tpu_custom_call.1} parent=1 // pred_fallthru
      _
    %456 = vsyncpa [#allocation3], 1
    %457 = vsyncpa [#allocation6], 1
    %458 = vsyncpa [#allocation4], 1

</llo_original>
